<compile_context>
chip_gen: v7x
topology: tpu7x:2x2x1
jax: 0.10.0
libtpu: 0.0.40
codegen_flags: <defaults>
</compile_context>

<pallas_src>
import functools

import jax
import jax.numpy as jnp
from jax.experimental import pallas as pl
from jax.experimental.pallas import tpu as pltpu


# ---------------------------------------------------------------------------
# Kernel
# ---------------------------------------------------------------------------
def _dqn_kernel(x_ref, *refs):
    """Fused MLP: (Linear -> ReLU) x (n-1) -> Linear, feature-major layout.

    refs = (w1, b1, ..., wn, bn, out).
      x_ref:  (tile, nb_states) f32/bf16    -- batch rows
      wi:     (out_i, in_i)     bf16        -- torch (out, in) layout
      bi:     (out_i, 1)        f32
      out:    (out_pad, tile)   f32         -- actions on sublanes, batch on lanes
    """
    out_ref = refs[-1]
    wb = refs[:-1]
    n_layers = len(wb) // 2

    # In-kernel cast of the input block (saves a separate XLA cast pass).
    x = x_ref[...].astype(jnp.bfloat16)                      # (tile, nb_states)

    # Layer 0: h = W0 @ x^T + b0, contracting on nb_states -> (hidden, tile).
    a = jax.lax.dot_general(
        wb[0][...], x, (((1,), (1,)), ((), ())),
        preferred_element_type=jnp.float32) + wb[1][...]
    h = jnp.maximum(a, 0.0).astype(jnp.bfloat16)

    for l in range(1, n_layers):
        w_ref = wb[2 * l]
        b_ref = wb[2 * l + 1]
        a = jnp.dot(w_ref[...], h,
                    preferred_element_type=jnp.float32) + b_ref[...]
        if l < n_layers - 1:
            h = jnp.maximum(a, 0.0).astype(jnp.bfloat16)
        else:
            out_ref[...] = a          # f32 (out_pad, tile); lane-dense store


# ---------------------------------------------------------------------------
# Wrapper / parameter prep
# ---------------------------------------------------------------------------
def _round_up(x, m):
    return ((x + m - 1) // m) * m


def _pick_batch_tile(B):
    """Batch tile = lane dim of the output block, so keep it a multiple of 128.

    B <= 1024: single grid step (v5e/v6e have 1 TensorCore; extra steps are
    pure ~0.35us/step overhead).  Larger batches: 1024-row tiles -> >= 2
    "parallel" steps, which shards across v7x's two TensorCores.  VMEM is a
    non-issue at these sizes on all generations.
    """
    Bp = _round_up(B, 128)
    if Bp <= 1024:
        return Bp
    return 1024


def prepare_dqn_params(params, sublane_pad=8):
    """One-time prep (hoisted out of the forward hot path).

    params: list of (W, b) with W shaped (out, in) like torch.nn.Linear.
    Returns (weights, biases, nb_actions):
      weights[i]: bf16 (out, in)  -- last layer's out dim padded to >= 8 rows
      biases[i]:  f32  (out, 1)   -- last layer padded to match
    """
    n = len(params)
    nb_actions = params[-1][0].shape[0]
    weights, biases = [], []
    for i, (w, b) in enumerate(params):
        w2 = jnp.asarray(w, jnp.float32)                   # (out, in)
        b2 = jnp.asarray(b, jnp.float32).reshape(-1, 1)    # (out, 1)
        if i == n - 1:
            out_dim = w2.shape[0]
            padded = _round_up(max(out_dim, sublane_pad), sublane_pad)
            if padded != out_dim:
                w2 = jnp.pad(w2, ((0, padded - out_dim), (0, 0)))
                b2 = jnp.pad(b2, ((0, padded - out_dim), (0, 0)))
        weights.append(w2.astype(jnp.bfloat16))
        biases.append(b2)                                  # keep f32
    return tuple(weights), tuple(biases), nb_actions


@functools.partial(jax.jit, static_argnames=("nb_actions",))
def dqn_forward(x, weights, biases, *, nb_actions):
    """Run the fused DQN MLP Pallas kernel.

    x:       (B, nb_states) float32 (or bf16) -- cast to bf16 inside the kernel
    weights: tuple of bf16 (out, in) matrices (from prepare_dqn_params)
    biases:  tuple of f32 (out, 1) columns
    Returns (B, nb_actions) float32 Q-values.
    """
    B, nb_states = x.shape
    out_rows = biases[-1].shape[0]          # sublane-padded action count (>= 8)

    tile = _pick_batch_tile(B)
    grid = (pl.cdiv(B, tile),)              # partial last block masked by Pallas

    flat_args = []
    wb_specs = []
    for w, b in zip(weights, biases):
        flat_args += [w, b]
        wb_specs += [
            pl.BlockSpec(w.shape, lambda i: (0, 0)),    # resident in VMEM
            pl.BlockSpec(b.shape, lambda i: (0, 0)),
        ]

    out_t = pl.pallas_call(
        _dqn_kernel,
        out_shape=jax.ShapeDtypeStruct((out_rows, B), jnp.float32),
        grid=grid,
        in_specs=[pl.BlockSpec((tile, nb_states), lambda i: (i, 0))] + wb_specs,
        out_specs=pl.BlockSpec((out_rows, tile), lambda i: (0, i)),
        compiler_params=pltpu.CompilerParams(
            dimension_semantics=("parallel",)),
    )(x, *flat_args)

    # Tiny epilogue on a (out_rows, B) array: drop sublane padding, restore
    # the caller-facing (B, nb_actions) layout.
    return out_t[:nb_actions, :].T


# ---------------------------------------------------------------------------
# Init + references
# ---------------------------------------------------------------------------
def init_dqn_params(key, nb_states, hidden_dim, nb_actions):
    """Deterministic init matching torch.nn.Linear default:
    W, b ~ U(-1/sqrt(fan_in), 1/sqrt(fan_in)); W shaped (out, in)."""
    dims = [nb_states] + [hidden_dim] * 5 + [nb_actions]
    params = []
    for fan_in, fan_out in zip(dims[:-1], dims[1:]):
        key, kw, kb = jax.random.split(key, 3)
        bound = 1.0 / (fan_in ** 0.5)
        w = jax.random.uniform(kw, (fan_out, fan_in), jnp.float32, -bound, bound)
        b = jax.random.uniform(kb, (fan_out,), jnp.float32, -bound, bound)
        params.append((w, b))
    return params


def dqn_reference_f32(x, params):
    """Plain f32 JAX reference (torch semantics)."""
    h = x
    for i, (w, b) in enumerate(params):
        h = h @ w.T + b
        if i < len(params) - 1:
            h = jnp.maximum(h, 0.0)
    return h


def dqn_reference_matched(x, weights, biases, nb_actions):
    """Reference with the same bf16-operand / f32-accumulate numerics as the kernel."""
    h = x.astype(jnp.bfloat16).T                           # (nb_states, B)
    n = len(weights)
    out = None
    for i in range(n):
        a = jnp.dot(weights[i], h, preferred_element_type=jnp.float32) + biases[i]
        if i < n - 1:
            h = jnp.maximum(a, 0.0).astype(jnp.bfloat16)
        else:
            out = a
    return out[:nb_actions, :].T


# ---------------------------------------------------------------------------
# Self-test
# ---------------------------------------------------------------------------
if __name__ == "__main__":
    config = dict(nb_states=16, hidden_dim=32, nb_actions=4)
    batch = 128   # multiple of 128 -> single lane-dense grid step

    key = jax.random.PRNGKey(0)
    key, kx = jax.random.split(key)
    x = jax.random.normal(kx, (batch, config["nb_states"]), jnp.float32)

    params = init_dqn_params(key, config["nb_states"],
                             config["hidden_dim"], config["nb_actions"])
    # One-time weight prep (hoisted out of the per-call hot path).
    weights, biases, nb_actions = prepare_dqn_params(params)

    out = dqn_forward(x, weights, biases, nb_actions=nb_actions)
    out = jax.block_until_ready(out)

    assert out.shape == (batch, nb_actions)

    ref_matched = dqn_reference_matched(x, weights, biases, nb_actions)
    assert jnp.allclose(out, ref_matched, atol=1e-2, rtol=1e-2), \
        "mismatch vs bf16-matched reference"

    # TODO(synk): bf16 weights/activations differ from exact f32 torch output at
    # the ~1e-2 level; acceptable for DQN inference, flagged for strict parity.
    ref_f32 = dqn_reference_f32(x, params)
    assert jnp.allclose(out, ref_f32, atol=5e-2, rtol=5e-2), \
        "mismatch vs f32 reference"

    print("KERNEL_OK")
</pallas_src>

<mosaic_0001>
module attributes {stable_mosaic.version = 11 : i64} {
  func.func @_dqn_kernel(%arg0: i32, %arg1: memref<128x16xf32, #tpu.memory_space<vmem>>, %arg2: memref<32x16xbf16, #tpu.memory_space<vmem>>, %arg3: memref<32x1xf32, #tpu.memory_space<vmem>>, %arg4: memref<32x32xbf16, #tpu.memory_space<vmem>>, %arg5: memref<32x1xf32, #tpu.memory_space<vmem>>, %arg6: memref<32x32xbf16, #tpu.memory_space<vmem>>, %arg7: memref<32x1xf32, #tpu.memory_space<vmem>>, %arg8: memref<32x32xbf16, #tpu.memory_space<vmem>>, %arg9: memref<32x1xf32, #tpu.memory_space<vmem>>, %arg10: memref<32x32xbf16, #tpu.memory_space<vmem>>, %arg11: memref<32x1xf32, #tpu.memory_space<vmem>>, %arg12: memref<8x32xbf16, #tpu.memory_space<vmem>>, %arg13: memref<8x1xf32, #tpu.memory_space<vmem>>, %arg14: memref<8x128xf32, #tpu.memory_space<vmem>>) attributes {dimension_semantics = [#tpu.dimension_semantics<parallel>], iteration_bounds = array<i64: 1>, scalar_prefetch = 0 : i64, scratch_operands = 0 : i64, tpu.core_type = #tpu.core_type<tc>, window_params = [{transform_indices = @transform_0, window_bounds = array<i64: 128, 16>}, {pipeline_mode = #tpu.pipeline_mode<synchronous>, transform_indices = @transform_1, window_bounds = array<i64: 32, 16>}, {pipeline_mode = #tpu.pipeline_mode<synchronous>, transform_indices = @transform_2, window_bounds = array<i64: 32, 1>}, {pipeline_mode = #tpu.pipeline_mode<synchronous>, transform_indices = @transform_3, window_bounds = array<i64: 32, 32>}, {pipeline_mode = #tpu.pipeline_mode<synchronous>, transform_indices = @transform_4, window_bounds = array<i64: 32, 1>}, {pipeline_mode = #tpu.pipeline_mode<synchronous>, transform_indices = @transform_5, window_bounds = array<i64: 32, 32>}, {pipeline_mode = #tpu.pipeline_mode<synchronous>, transform_indices = @transform_6, window_bounds = array<i64: 32, 1>}, {pipeline_mode = #tpu.pipeline_mode<synchronous>, transform_indices = @transform_7, window_bounds = array<i64: 32, 32>}, {pipeline_mode = #tpu.pipeline_mode<synchronous>, transform_indices = @transform_8, window_bounds = array<i64: 32, 1>}, {pipeline_mode = #tpu.pipeline_mode<synchronous>, transform_indices = @transform_9, window_bounds = array<i64: 32, 32>}, {pipeline_mode = #tpu.pipeline_mode<synchronous>, transform_indices = @transform_10, window_bounds = array<i64: 32, 1>}, {pipeline_mode = #tpu.pipeline_mode<synchronous>, transform_indices = @transform_11, window_bounds = array<i64: 8, 32>}, {pipeline_mode = #tpu.pipeline_mode<synchronous>, transform_indices = @transform_12, window_bounds = array<i64: 8, 1>}, {transform_indices = @transform_13, window_bounds = array<i64: 8, 128>}]} {
    %c0 = arith.constant 0 : index
    %c0_0 = arith.constant 0 : index
    %0 = vector.load %arg1[%c0, %c0_0] : memref<128x16xf32, #tpu.memory_space<vmem>>, vector<128x16xf32>
    %1 = arith.truncf %0 : vector<128x16xf32> to vector<128x16xbf16>
    %c0_1 = arith.constant 0 : index
    %c0_2 = arith.constant 0 : index
    %2 = vector.load %arg2[%c0_1, %c0_2] : memref<32x16xbf16, #tpu.memory_space<vmem>>, vector<32x16xbf16>
    %cst = arith.constant dense<0.000000e+00> : vector<32x128xf32>
    %3 = tpu.matmul %2, %1, %cst {dimension_numbers = #tpu.dot_dimension_numbers<[1], [1], [0], [0], [0, 0, 1, 0], [], []>} : vector<32x16xbf16>, vector<128x16xbf16>, vector<32x128xf32> -> vector<32x128xf32>
    %c0_3 = arith.constant 0 : index
    %c0_4 = arith.constant 0 : index
    %4 = vector.load %arg3[%c0_3, %c0_4] : memref<32x1xf32, #tpu.memory_space<vmem>>, vector<32x1xf32>
    %5 = vector.broadcast %4 : vector<32x1xf32> to vector<32x128xf32>
    %6 = arith.addf %3, %5 : vector<32x128xf32>
    %cst_5 = arith.constant 0.000000e+00 : f32
    %7 = vector.broadcast %cst_5 : f32 to vector<32x128xf32>
    %8 = arith.maximumf %6, %7 : vector<32x128xf32>
    %9 = arith.truncf %8 : vector<32x128xf32> to vector<32x128xbf16>
    %c0_6 = arith.constant 0 : index
    %c0_7 = arith.constant 0 : index
    %10 = vector.load %arg4[%c0_6, %c0_7] : memref<32x32xbf16, #tpu.memory_space<vmem>>, vector<32x32xbf16>
    %cst_8 = arith.constant dense<0.000000e+00> : vector<32x128xf32>
    %11 = tpu.matmul %10, %9, %cst_8 {dimension_numbers = #tpu.dot_dimension_numbers<[1], [0], [0], [1], [0, 0, 1, 1], [], []>} : vector<32x32xbf16>, vector<32x128xbf16>, vector<32x128xf32> -> vector<32x128xf32>
    %c0_9 = arith.constant 0 : index
    %c0_10 = arith.constant 0 : index
    %12 = vector.load %arg5[%c0_9, %c0_10] : memref<32x1xf32, #tpu.memory_space<vmem>>, vector<32x1xf32>
    %13 = vector.broadcast %12 : vector<32x1xf32> to vector<32x128xf32>
    %14 = arith.addf %11, %13 : vector<32x128xf32>
    %cst_11 = arith.constant 0.000000e+00 : f32
    %15 = vector.broadcast %cst_11 : f32 to vector<32x128xf32>
    %16 = arith.maximumf %14, %15 : vector<32x128xf32>
    %17 = arith.truncf %16 : vector<32x128xf32> to vector<32x128xbf16>
    %c0_12 = arith.constant 0 : index
    %c0_13 = arith.constant 0 : index
    %18 = vector.load %arg6[%c0_12, %c0_13] : memref<32x32xbf16, #tpu.memory_space<vmem>>, vector<32x32xbf16>
    %cst_14 = arith.constant dense<0.000000e+00> : vector<32x128xf32>
    %19 = tpu.matmul %18, %17, %cst_14 {dimension_numbers = #tpu.dot_dimension_numbers<[1], [0], [0], [1], [0, 0, 1, 1], [], []>} : vector<32x32xbf16>, vector<32x128xbf16>, vector<32x128xf32> -> vector<32x128xf32>
    %c0_15 = arith.constant 0 : index
    %c0_16 = arith.constant 0 : index
    %20 = vector.load %arg7[%c0_15, %c0_16] : memref<32x1xf32, #tpu.memory_space<vmem>>, vector<32x1xf32>
    %21 = vector.broadcast %20 : vector<32x1xf32> to vector<32x128xf32>
    %22 = arith.addf %19, %21 : vector<32x128xf32>
    %cst_17 = arith.constant 0.000000e+00 : f32
    %23 = vector.broadcast %cst_17 : f32 to vector<32x128xf32>
    %24 = arith.maximumf %22, %23 : vector<32x128xf32>
    %25 = arith.truncf %24 : vector<32x128xf32> to vector<32x128xbf16>
    %c0_18 = arith.constant 0 : index
    %c0_19 = arith.constant 0 : index
    %26 = vector.load %arg8[%c0_18, %c0_19] : memref<32x32xbf16, #tpu.memory_space<vmem>>, vector<32x32xbf16>
    %cst_20 = arith.constant dense<0.000000e+00> : vector<32x128xf32>
    %27 = tpu.matmul %26, %25, %cst_20 {dimension_numbers = #tpu.dot_dimension_numbers<[1], [0], [0], [1], [0, 0, 1, 1], [], []>} : vector<32x32xbf16>, vector<32x128xbf16>, vector<32x128xf32> -> vector<32x128xf32>
    %c0_21 = arith.constant 0 : index
    %c0_22 = arith.constant 0 : index
    %28 = vector.load %arg9[%c0_21, %c0_22] : memref<32x1xf32, #tpu.memory_space<vmem>>, vector<32x1xf32>
    %29 = vector.broadcast %28 : vector<32x1xf32> to vector<32x128xf32>
    %30 = arith.addf %27, %29 : vector<32x128xf32>
    %cst_23 = arith.constant 0.000000e+00 : f32
    %31 = vector.broadcast %cst_23 : f32 to vector<32x128xf32>
    %32 = arith.maximumf %30, %31 : vector<32x128xf32>
    %33 = arith.truncf %32 : vector<32x128xf32> to vector<32x128xbf16>
    %c0_24 = arith.constant 0 : index
    %c0_25 = arith.constant 0 : index
    %34 = vector.load %arg10[%c0_24, %c0_25] : memref<32x32xbf16, #tpu.memory_space<vmem>>, vector<32x32xbf16>
    %cst_26 = arith.constant dense<0.000000e+00> : vector<32x128xf32>
    %35 = tpu.matmul %34, %33, %cst_26 {dimension_numbers = #tpu.dot_dimension_numbers<[1], [0], [0], [1], [0, 0, 1, 1], [], []>} : vector<32x32xbf16>, vector<32x128xbf16>, vector<32x128xf32> -> vector<32x128xf32>
    %c0_27 = arith.constant 0 : index
    %c0_28 = arith.constant 0 : index
    %36 = vector.load %arg11[%c0_27, %c0_28] : memref<32x1xf32, #tpu.memory_space<vmem>>, vector<32x1xf32>
    %37 = vector.broadcast %36 : vector<32x1xf32> to vector<32x128xf32>
    %38 = arith.addf %35, %37 : vector<32x128xf32>
    %cst_29 = arith.constant 0.000000e+00 : f32
    %39 = vector.broadcast %cst_29 : f32 to vector<32x128xf32>
    %40 = arith.maximumf %38, %39 : vector<32x128xf32>
    %41 = arith.truncf %40 : vector<32x128xf32> to vector<32x128xbf16>
    %c0_30 = arith.constant 0 : index
    %c0_31 = arith.constant 0 : index
    %42 = vector.load %arg12[%c0_30, %c0_31] : memref<8x32xbf16, #tpu.memory_space<vmem>>, vector<8x32xbf16>
    %cst_32 = arith.constant dense<0.000000e+00> : vector<8x128xf32>
    %43 = tpu.matmul %42, %41, %cst_32 {dimension_numbers = #tpu.dot_dimension_numbers<[1], [0], [0], [1], [0, 0, 1, 1], [], []>} : vector<8x32xbf16>, vector<32x128xbf16>, vector<8x128xf32> -> vector<8x128xf32>
    %c0_33 = arith.constant 0 : index
    %c0_34 = arith.constant 0 : index
    %44 = vector.load %arg13[%c0_33, %c0_34] : memref<8x1xf32, #tpu.memory_space<vmem>>, vector<8x1xf32>
    %45 = vector.broadcast %44 : vector<8x1xf32> to vector<8x128xf32>
    %46 = arith.addf %43, %45 : vector<8x128xf32>
    %c0_35 = arith.constant 0 : index
    %c0_36 = arith.constant 0 : index
    %47 = vector.load %arg14[%c0_35, %c0_36] : memref<8x128xf32, #tpu.memory_space<vmem>>, vector<8x128xf32>
    tpu.vector_store %arg14[%c0_35, %c0_36], %46 {strides = array<i32>} : memref<8x128xf32, #tpu.memory_space<vmem>>, vector<8x128xf32>,
    return
  }
  func.func @transform_0(%arg0: i32) -> (i32, i32) {
    %c0_i32 = arith.constant 0 : i32
    %c0_i32_0 = arith.constant 0 : i32
    return %arg0, %c0_i32 : i32, i32
  }
  func.func @transform_1(%arg0: i32) -> (i32, i32) {
    %c0_i32 = arith.constant 0 : i32
    %c0_i32_0 = arith.constant 0 : i32
    %c0_i32_1 = arith.constant 0 : i32
    return %c0_i32, %c0_i32_0 : i32, i32
  }
  func.func @transform_2(%arg0: i32) -> (i32, i32) {
    %c0_i32 = arith.constant 0 : i32
    %c0_i32_0 = arith.constant 0 : i32
    %c0_i32_1 = arith.constant 0 : i32
    return %c0_i32, %c0_i32_0 : i32, i32
  }
  func.func @transform_3(%arg0: i32) -> (i32, i32) {
    %c0_i32 = arith.constant 0 : i32
    %c0_i32_0 = arith.constant 0 : i32
    %c0_i32_1 = arith.constant 0 : i32
    return %c0_i32, %c0_i32_0 : i32, i32
  }
  func.func @transform_4(%arg0: i32) -> (i32, i32) {
    %c0_i32 = arith.constant 0 : i32
    %c0_i32_0 = arith.constant 0 : i32
    %c0_i32_1 = arith.constant 0 : i32
    return %c0_i32, %c0_i32_0 : i32, i32
  }
  func.func @transform_5(%arg0: i32) -> (i32, i32) {
    %c0_i32 = arith.constant 0 : i32
    %c0_i32_0 = arith.constant 0 : i32
    %c0_i32_1 = arith.constant 0 : i32
    return %c0_i32, %c0_i32_0 : i32, i32
  }
  func.func @transform_6(%arg0: i32) -> (i32, i32) {
    %c0_i32 = arith.constant 0 : i32
    %c0_i32_0 = arith.constant 0 : i32
    %c0_i32_1 = arith.constant 0 : i32
    return %c0_i32, %c0_i32_0 : i32, i32
  }
  func.func @transform_7(%arg0: i32) -> (i32, i32) {
    %c0_i32 = arith.constant 0 : i32
    %c0_i32_0 = arith.constant 0 : i32
    %c0_i32_1 = arith.constant 0 : i32
    return %c0_i32, %c0_i32_0 : i32, i32
  }
  func.func @transform_8(%arg0: i32) -> (i32, i32) {
    %c0_i32 = arith.constant 0 : i32
    %c0_i32_0 = arith.constant 0 : i32
    %c0_i32_1 = arith.constant 0 : i32
    return %c0_i32, %c0_i32_0 : i32, i32
  }
  func.func @transform_9(%arg0: i32) -> (i32, i32) {
    %c0_i32 = arith.constant 0 : i32
    %c0_i32_0 = arith.constant 0 : i32
    %c0_i32_1 = arith.constant 0 : i32
    return %c0_i32, %c0_i32_0 : i32, i32
  }
  func.func @transform_10(%arg0: i32) -> (i32, i32) {
    %c0_i32 = arith.constant 0 : i32
    %c0_i32_0 = arith.constant 0 : i32
    %c0_i32_1 = arith.constant 0 : i32
    return %c0_i32, %c0_i32_0 : i32, i32
  }
  func.func @transform_11(%arg0: i32) -> (i32, i32) {
    %c0_i32 = arith.constant 0 : i32
    %c0_i32_0 = arith.constant 0 : i32
    %c0_i32_1 = arith.constant 0 : i32
    return %c0_i32, %c0_i32_0 : i32, i32
  }
  func.func @transform_12(%arg0: i32) -> (i32, i32) {
    %c0_i32 = arith.constant 0 : i32
    %c0_i32_0 = arith.constant 0 : i32
    %c0_i32_1 = arith.constant 0 : i32
    return %c0_i32, %c0_i32_0 : i32, i32
  }
  func.func @transform_13(%arg0: i32) -> (i32, i32) {
    %c0_i32 = arith.constant 0 : i32
    %c0_i32_0 = arith.constant 0 : i32
    return %c0_i32, %arg0 : i32, i32
  }
}

</mosaic_0001>

<llo_original>
// kernel: dqn_forward.1
$region0: #{dqn_forward.1}
  #allocation0 [shape = 'u32[]', space=smem, size = 0x4, offset = 0x4, fixed_abs, tag = 'smem constant byte address 0x4 - core index']
  #allocation1 [shape = 'u32[144,128]{1,0:T(1,128)}', space=vmem, size = 0x12000, scoped, tag = 'internal scratch']
  %s0 = inlined_call_operand.vmem [shape: f32[128,16], index: 0, kind: input, shape index: {}]
  %s1 = inlined_call_operand.vmem [shape: bf16[32,16], index: 1, kind: input, shape index: {}]
  %s2 = inlined_call_operand.vmem [shape: f32[32,1], index: 2, kind: input, shape index: {}]
  %s3 = inlined_call_operand.vmem [shape: bf16[32,32], index: 3, kind: input, shape index: {}]
  %s4 = inlined_call_operand.vmem [shape: f32[32,1], index: 4, kind: input, shape index: {}]
  %s5 = inlined_call_operand.vmem [shape: bf16[32,32], index: 5, kind: input, shape index: {}]
  %s6 = inlined_call_operand.vmem [shape: f32[32,1], index: 6, kind: input, shape index: {}]
  %s7 = inlined_call_operand.vmem [shape: bf16[32,32], index: 7, kind: input, shape index: {}]
  %s8 = inlined_call_operand.vmem [shape: f32[32,1], index: 8, kind: input, shape index: {}]
  %s9 = inlined_call_operand.vmem [shape: bf16[32,32], index: 9, kind: input, shape index: {}]
  %s10 = inlined_call_operand.vmem [shape: f32[32,1], index: 10, kind: input, shape index: {}]
  %s11 = inlined_call_operand.vmem [shape: bf16[8,32], index: 11, kind: input, shape index: {}]
  %s12 = inlined_call_operand.vmem [shape: f32[8,1], index: 12, kind: input, shape index: {}]
  %s13 = inlined_call_operand.vmem [shape: f32[8,128], index: 13, kind: output, shape index: {}]
  %s14 = sld [smem:[#allocation0]]
  $region62: #{dqn_forward.1} parent=0
    _
  %s16 = ssub.s32 1, %s14
  %s17 = scalar_select 0, %s16, %s14
  // Predicated region
  $region2: #{dqn_forward.1} parent=0 // pred_check
    _
  $region3: #{dqn_forward.1} parent=0 // pred_check_branch
    %19 = sbr.rel (0) target = $region5
  $region4: #{dqn_forward.1} parent=0 // pred_region
    _
  $region5: #{dqn_forward.1} parent=0 // pred_fallthru
    _
  // Predicated region
  $region6: #{dqn_forward.1} parent=0 // pred_check
    _
  $region7: #{dqn_forward.1} parent=0 // pred_check_branch
    %21 = sbr.rel (0) target = $region9
  $region8: #{dqn_forward.1} parent=0 // pred_region
    _
  $region9: #{dqn_forward.1} parent=0 // pred_fallthru
    _
  // Predicated region
  $region10: #{dqn_forward.1} parent=0 // pred_check
    _
  $region11: #{dqn_forward.1} parent=0 // pred_check_branch
    %23 = sbr.rel (0) target = $region13
  $region12: #{dqn_forward.1} parent=0 // pred_region
    _
  $region13: #{dqn_forward.1} parent=0 // pred_fallthru
    _
  // Predicated region
  $region14: #{dqn_forward.1} parent=0 // pred_check
    _
  $region15: #{dqn_forward.1} parent=0 // pred_check_branch
    %25 = sbr.rel (0) target = $region17
  $region16: #{dqn_forward.1} parent=0 // pred_region
    _
  $region17: #{dqn_forward.1} parent=0 // pred_fallthru
    _
  // Predicated region
  $region18: #{dqn_forward.1} parent=0 // pred_check
    _
  $region19: #{dqn_forward.1} parent=0 // pred_check_branch
    %27 = sbr.rel (0) target = $region21
  $region20: #{dqn_forward.1} parent=0 // pred_region
    _
  $region21: #{dqn_forward.1} parent=0 // pred_fallthru
    _
  // Predicated region
  $region22: #{dqn_forward.1} parent=0 // pred_check
    _
  $region23: #{dqn_forward.1} parent=0 // pred_check_branch
    %29 = sbr.rel (0) target = $region25
  $region24: #{dqn_forward.1} parent=0 // pred_region
    _
  $region25: #{dqn_forward.1} parent=0 // pred_fallthru
    _
  // Predicated region
  $region26: #{dqn_forward.1} parent=0 // pred_check
    _
  $region27: #{dqn_forward.1} parent=0 // pred_check_branch
    %31 = sbr.rel (0) target = $region29
  $region28: #{dqn_forward.1} parent=0 // pred_region
    _
  $region29: #{dqn_forward.1} parent=0 // pred_fallthru
    _
  // Predicated region
  $region30: #{dqn_forward.1} parent=0 // pred_check
    _
  $region31: #{dqn_forward.1} parent=0 // pred_check_branch
    %33 = sbr.rel (0) target = $region33
  $region32: #{dqn_forward.1} parent=0 // pred_region
    _
  $region33: #{dqn_forward.1} parent=0 // pred_fallthru
    _
  // Predicated region
  $region34: #{dqn_forward.1} parent=0 // pred_check
    _
  $region35: #{dqn_forward.1} parent=0 // pred_check_branch
    %35 = sbr.rel (0) target = $region37
  $region36: #{dqn_forward.1} parent=0 // pred_region
    _
  $region37: #{dqn_forward.1} parent=0 // pred_fallthru
    _
  // Predicated region
  $region38: #{dqn_forward.1} parent=0 // pred_check
    _
  $region39: #{dqn_forward.1} parent=0 // pred_check_branch
    %37 = sbr.rel (0) target = $region41
  $region40: #{dqn_forward.1} parent=0 // pred_region
    _
  $region41: #{dqn_forward.1} parent=0 // pred_fallthru
    _
  // Predicated region
  $region42: #{dqn_forward.1} parent=0 // pred_check
    _
  $region43: #{dqn_forward.1} parent=0 // pred_check_branch
    %39 = sbr.rel (0) target = $region45
  $region44: #{dqn_forward.1} parent=0 // pred_region
    _
  $region45: #{dqn_forward.1} parent=0 // pred_fallthru
    _
  // Predicated region
  $region46: #{dqn_forward.1} parent=0 // pred_check
    _
  $region47: #{dqn_forward.1} parent=0 // pred_check_branch
    %41 = sbr.rel (0) target = $region49
  $region48: #{dqn_forward.1} parent=0 // pred_region
    _
  $region49: #{dqn_forward.1} parent=0 // pred_fallthru
    _
  // Predicated region
  $region50: #{dqn_forward.1} parent=0 // pred_check
    _
  $region51: #{dqn_forward.1} parent=0 // pred_check_branch
    %43 = sbr.rel (0) target = $region53
  $region52: #{dqn_forward.1} parent=0 // pred_region
    _
  $region53: #{dqn_forward.1} parent=0 // pred_fallthru
    _
  %v45 = vld [vmem:[%s0] sm:$0xff]
  %v46 = vld [vmem:[%s0 + $0x8] sm:$0xff]
  %v47 = vld [vmem:[%s0 + $0x10] sm:$0xff]
  %v48 = vld [vmem:[%s0 + $0x18] sm:$0xff]
  %v49 = vld [vmem:[%s0 + $0x20] sm:$0xff]
  %v50 = vld [vmem:[%s0 + $0x28] sm:$0xff]
  %v51 = vld [vmem:[%s0 + $0x30] sm:$0xff]
  %v52 = vld [vmem:[%s0 + $0x38] sm:$0xff]
  %v53 = vld [vmem:[%s0 + $0x40] sm:$0xff]
  %v54 = vld [vmem:[%s0 + $0x48] sm:$0xff]
  %v55 = vld [vmem:[%s0 + $0x50] sm:$0xff]
  %v56 = vld [vmem:[%s0 + $0x58] sm:$0xff]
  %v57 = vld [vmem:[%s0 + $0x60] sm:$0xff]
  %v58 = vld [vmem:[%s0 + $0x68] sm:$0xff]
  %v59 = vld [vmem:[%s0 + $0x70] sm:$0xff]
  %v60 = vld [vmem:[%s0 + $0x78] sm:$0xff]
  %v61 = vpack.c.bf16 %v46, %v45
  %v62 = vpack.c.bf16 %v48, %v47
  %v63 = vpack.c.bf16 %v50, %v49
  %v64 = vpack.c.bf16 %v52, %v51
  %v65 = vpack.c.bf16 %v54, %v53
  %v66 = vpack.c.bf16 %v56, %v55
  %v67 = vpack.c.bf16 %v58, %v57
  %v68 = vpack.c.bf16 %v60, %v59
  %v69 = vld [vmem:[%s1] sm:$0xf]
  %v70 = vld [vmem:[%s1 + $0x4] sm:$0xf]
  %v71 = vld [vmem:[%s1 + $0x8] sm:$0xf]
  %v72 = vld [vmem:[%s1 + $0xc] sm:$0xf]
  %v73 = vld [vmem:[%s2] sm:$0xff]
  %v74 = vld [vmem:[%s2 + $0x8] sm:$0xff]
  %v75 = vld [vmem:[%s2 + $0x10] sm:$0xff]
  %v76 = vld [vmem:[%s2 + $0x18] sm:$0xff]
  %78 = vset.pattern.permute.xlu0 0
  %79 = vperm.xlu0 %78, %v73
  %v80 = vpop.permute.xlu0 %79
  %83 = vset.pattern.permute.xlu0 0
  %84 = vperm.xlu0 %83, %v74
  %v85 = vpop.permute.xlu0 %84
  %88 = vset.pattern.permute.xlu0 0
  %89 = vperm.xlu0 %88, %v75
  %v90 = vpop.permute.xlu0 %89
  %93 = vset.pattern.permute.xlu0 0
  %94 = vperm.xlu0 %93, %v76
  %v95 = vpop.permute.xlu0 %94
  %v101 = vunpack.c.l.b16 %v69
  %v102 = vunpack.c.l.b16 %v70
  %v103 = vunpack.c.l.b16 %v71
  %v104 = vunpack.c.l.b16 %v72
  %v105 = vpack.c.b16 %v102, %v101
  %v106 = vpack.c.b16 %v104, %v103
  %vm107 = vcmask 130048
  %v109 = vsel %vm107, %v105, 0
  %v112 = vsel %vm107, %v106, 0
  %v115 = vsel %vm107, %v61, 0
  %v118 = vsel %vm107, %v62, 0
  %v121 = vsel %vm107, %v63, 0
  %v124 = vsel %vm107, %v64, 0
  %v127 = vsel %vm107, %v65, 0
  %v130 = vsel %vm107, %v66, 0
  %v133 = vsel %vm107, %v67, 0
  %v136 = vsel %vm107, %v68, 0
  %138 = vmatprep.subr.bf16.mxu0 0
  %139 = vmatpush1.bf16.xpose.msra.mxu0 %v115
  %140 = vmatprep.subr.bf16.mxu0 0
  %141 = vmatpush1.bf16.xpose.msra.mxu0 %v118
  %142 = vmatprep.subr.bf16.mxu0 0
  %143 = vmatpush1.bf16.xpose.msra.mxu0 %v121
  %144 = vmatprep.subr.bf16.mxu0 0
  %145 = vmatpush1.bf16.xpose.msra.mxu0 %v124
  %146 = vmatprep.subr.bf16.mxu0 0
  %147 = vmatpush1.bf16.xpose.msra.mxu0 %v127
  %148 = vmatprep.subr.bf16.mxu0 0
  %149 = vmatpush1.bf16.xpose.msra.mxu0 %v130
  %150 = vmatprep.subr.bf16.mxu0 0
  %151 = vmatpush1.bf16.xpose.msra.mxu0 %v133
  %152 = vmatprep.subr.bf16.mxu0 0
  %153 = vmatpush1.bf16.xpose.msra.mxu0 %v136
  %154 = vmatprep.subr.bf16.mxu0 0
  %155 = vmatpush1.bf16.xpose.msra.mxu0 0
  %156 = vmatprep.subr.bf16.mxu0 0
  %157 = vmatpush1.bf16.xpose.msra.mxu0 0
  %158 = vmatprep.subr.bf16.mxu0 0
  %159 = vmatpush1.bf16.xpose.msra.mxu0 0
  %160 = vmatprep.subr.bf16.mxu0 0
  %161 = vmatpush1.bf16.xpose.msra.mxu0 0
  %162 = vmatprep.subr.bf16.mxu0 0
  %163 = vmatpush1.bf16.xpose.msra.mxu0 0
  %164 = vmatprep.subr.bf16.mxu0 0
  %165 = vmatpush1.bf16.xpose.msra.mxu0 0
  %166 = vmatprep.subr.bf16.mxu0 0
  %167 = vmatpush1.bf16.xpose.msra.mxu0 0
  %168 = vmatprep.subr.bf16.mxu0 0
  %169 = vmatpush1.bf16.xpose.msra.mxu0 0
  %170 = vmatprep.mubr.bf16.mxu0 0
  %171 = vmatmul.mubr.bf16.gmra.mrb[0].mxu0 %v109
  %v172 = vpop.f32.mrb[0].mxu0
  %v173 = vadd.f32 %v80, %v172
  %v174 = vpop.f32.mrb[0].mxu0
  %v175 = vpop.f32.mrb[0].mxu0
  %v176 = vadd.f32 %v85, %v175
  %v177 = vpop.f32.mrb[0].mxu0
  %178 = vmatprep.mubr.bf16.mxu0 0
  %179 = vmatmul.mubr.bf16.gmra.mrb[0].mxu0 %v112
  %v180 = vpop.f32.mrb[0].mxu0
  %v181 = vadd.f32 %v90, %v180
  %v182 = vpop.f32.mrb[0].mxu0
  %v183 = vpop.f32.mrb[0].mxu0
  %v184 = vadd.f32 %v95, %v183
  %v185 = vpop.f32.mrb[0].mxu0
  %186 = vdwg.mxu0
  %v187 = vmax.f32 %v173, 0.0
  %v188 = vmax.f32 %v176, 0.0
  %v189 = vmax.f32 %v181, 0.0
  %v190 = vmax.f32 %v184, 0.0
  %v191 = vpack.c.bf16 %v188, %v187
  %v192 = vpack.c.bf16 %v190, %v189
  %v193 = vld [vmem:[%s3] sm:$0xf]
  %v194 = vld [vmem:[%s3 + $0x4] sm:$0xf]
  %v195 = vld [vmem:[%s3 + $0x8] sm:$0xf]
  %v196 = vld [vmem:[%s3 + $0xc] sm:$0xf]
  %v197 = vld [vmem:[%s4] sm:$0xff]
  %v198 = vld [vmem:[%s4 + $0x8] sm:$0xff]
  %v199 = vld [vmem:[%s4 + $0x10] sm:$0xff]
  %v200 = vld [vmem:[%s4 + $0x18] sm:$0xff]
  %202 = vset.pattern.permute.xlu0 0
  %203 = vperm.xlu0 %202, %v197
  %v204 = vpop.permute.xlu0 %203
  %207 = vset.pattern.permute.xlu0 0
  %208 = vperm.xlu0 %207, %v198
  %v209 = vpop.permute.xlu0 %208
  %212 = vset.pattern.permute.xlu0 0
  %213 = vperm.xlu0 %212, %v199
  %v214 = vpop.permute.xlu0 %213
  %217 = vset.pattern.permute.xlu0 0
  %218 = vperm.xlu0 %217, %v200
  %v219 = vpop.permute.xlu0 %218
  %v225 = vunpack.c.l.b16 %v193
  %v226 = vunpack.c.l.b16 %v194
  %v227 = vunpack.c.l.b16 %v195
  %v228 = vunpack.c.l.b16 %v196
  %v229 = vpack.c.b16 %v226, %v225
  %v230 = vpack.c.b16 %v228, %v227
  %vm231 = vcmask 261120
  %v233 = vsel %vm231, %v229, 0
  %v236 = vsel %vm231, %v230, 0
  %238 = vmatprep.subr.bf16.mxu0 0
  %239 = vmatpush1.bf16.msra.mxu0 %v191
  %240 = vmatprep.subr.bf16.mxu0 0
  %241 = vmatpush1.bf16.msra.mxu0 %v192
  %242 = vmatprep.subr.bf16.mxu0 0
  %243 = vmatpush1.bf16.msra.mxu0 0
  %244 = vmatprep.subr.bf16.mxu0 0
  %245 = vmatpush1.bf16.msra.mxu0 0
  %246 = vmatprep.subr.bf16.mxu0 0
  %247 = vmatpush1.bf16.msra.mxu0 0
  %248 = vmatprep.subr.bf16.mxu0 0
  %249 = vmatpush1.bf16.msra.mxu0 0
  %250 = vmatprep.subr.bf16.mxu0 0
  %251 = vmatpush1.bf16.msra.mxu0 0
  %252 = vmatprep.subr.bf16.mxu0 0
  %253 = vmatpush1.bf16.msra.mxu0 0
  %254 = vmatprep.subr.bf16.mxu0 0
  %255 = vmatpush1.bf16.msra.mxu0 0
  %256 = vmatprep.subr.bf16.mxu0 0
  %257 = vmatpush1.bf16.msra.mxu0 0
  %258 = vmatprep.subr.bf16.mxu0 0
  %259 = vmatpush1.bf16.msra.mxu0 0
  %260 = vmatprep.subr.bf16.mxu0 0
  %261 = vmatpush1.bf16.msra.mxu0 0
  %262 = vmatprep.subr.bf16.mxu0 0
  %263 = vmatpush1.bf16.msra.mxu0 0
  %264 = vmatprep.subr.bf16.mxu0 0
  %265 = vmatpush1.bf16.msra.mxu0 0
  %266 = vmatprep.subr.bf16.mxu0 0
  %267 = vmatpush1.bf16.msra.mxu0 0
  %268 = vmatprep.subr.bf16.mxu0 0
  %269 = vmatpush1.bf16.msra.mxu0 0
  %270 = vmatprep.mubr.bf16.mxu0 0
  %271 = vmatmul.mubr.bf16.gmra.mrb[0].mxu0 %v233
  %v272 = vpop.f32.mrb[0].mxu0
  %v273 = vadd.f32 %v204, %v272
  %v274 = vpop.f32.mrb[0].mxu0
  %v275 = vpop.f32.mrb[0].mxu0
  %v276 = vadd.f32 %v209, %v275
  %v277 = vpop.f32.mrb[0].mxu0
  %278 = vmatprep.mubr.bf16.mxu0 0
  %279 = vmatmul.mubr.bf16.gmra.mrb[0].mxu0 %v236
  %v280 = vpop.f32.mrb[0].mxu0
  %v281 = vadd.f32 %v214, %v280
  %v282 = vpop.f32.mrb[0].mxu0
  %v283 = vpop.f32.mrb[0].mxu0
  %v284 = vadd.f32 %v219, %v283
  %v285 = vpop.f32.mrb[0].mxu0
  %286 = vdwg.mxu0
  %v287 = vmax.f32 %v273, 0.0
  %v288 = vmax.f32 %v276, 0.0
  %v289 = vmax.f32 %v281, 0.0
  %v290 = vmax.f32 %v284, 0.0
  %v291 = vpack.c.bf16 %v288, %v287
  %v292 = vpack.c.bf16 %v290, %v289
  %v293 = vld [vmem:[%s5] sm:$0xf]
  %v294 = vld [vmem:[%s5 + $0x4] sm:$0xf]
  %v295 = vld [vmem:[%s5 + $0x8] sm:$0xf]
  %v296 = vld [vmem:[%s5 + $0xc] sm:$0xf]
  %v297 = vld [vmem:[%s6] sm:$0xff]
  %v298 = vld [vmem:[%s6 + $0x8] sm:$0xff]
  %v299 = vld [vmem:[%s6 + $0x10] sm:$0xff]
  %v300 = vld [vmem:[%s6 + $0x18] sm:$0xff]
  %302 = vset.pattern.permute.xlu0 0
  %303 = vperm.xlu0 %302, %v297
  %v304 = vpop.permute.xlu0 %303
  %307 = vset.pattern.permute.xlu0 0
  %308 = vperm.xlu0 %307, %v298
  %v309 = vpop.permute.xlu0 %308
  %312 = vset.pattern.permute.xlu0 0
  %313 = vperm.xlu0 %312, %v299
  %v314 = vpop.permute.xlu0 %313
  %317 = vset.pattern.permute.xlu0 0
  %318 = vperm.xlu0 %317, %v300
  %v319 = vpop.permute.xlu0 %318
  %v325 = vunpack.c.l.b16 %v293
  %v326 = vunpack.c.l.b16 %v294
  %v327 = vunpack.c.l.b16 %v295
  %v328 = vunpack.c.l.b16 %v296
  %v329 = vpack.c.b16 %v326, %v325
  %v330 = vpack.c.b16 %v328, %v327
  %v332 = vsel %vm231, %v329, 0
  %v335 = vsel %vm231, %v330, 0
  %337 = vmatprep.subr.bf16.mxu0 0
  %338 = vmatpush1.bf16.msra.mxu0 %v291
  %339 = vmatprep.subr.bf16.mxu0 0
  %340 = vmatpush1.bf16.msra.mxu0 %v292
  %341 = vmatprep.subr.bf16.mxu0 0
  %342 = vmatpush1.bf16.msra.mxu0 0
  %343 = vmatprep.subr.bf16.mxu0 0
  %344 = vmatpush1.bf16.msra.mxu0 0
  %345 = vmatprep.subr.bf16.mxu0 0
  %346 = vmatpush1.bf16.msra.mxu0 0
  %347 = vmatprep.subr.bf16.mxu0 0
  %348 = vmatpush1.bf16.msra.mxu0 0
  %349 = vmatprep.subr.bf16.mxu0 0
  %350 = vmatpush1.bf16.msra.mxu0 0
  %351 = vmatprep.subr.bf16.mxu0 0
  %352 = vmatpush1.bf16.msra.mxu0 0
  %353 = vmatprep.subr.bf16.mxu0 0
  %354 = vmatpush1.bf16.msra.mxu0 0
  %355 = vmatprep.subr.bf16.mxu0 0
  %356 = vmatpush1.bf16.msra.mxu0 0
  %357 = vmatprep.subr.bf16.mxu0 0
  %358 = vmatpush1.bf16.msra.mxu0 0
  %359 = vmatprep.subr.bf16.mxu0 0
  %360 = vmatpush1.bf16.msra.mxu0 0
  %361 = vmatprep.subr.bf16.mxu0 0
  %362 = vmatpush1.bf16.msra.mxu0 0
  %363 = vmatprep.subr.bf16.mxu0 0
  %364 = vmatpush1.bf16.msra.mxu0 0
  %365 = vmatprep.subr.bf16.mxu0 0
  %366 = vmatpush1.bf16.msra.mxu0 0
  %367 = vmatprep.subr.bf16.mxu0 0
  %368 = vmatpush1.bf16.msra.mxu0 0
  %369 = vmatprep.mubr.bf16.mxu0 0
  %370 = vmatmul.mubr.bf16.gmra.mrb[0].mxu0 %v332
  %v371 = vpop.f32.mrb[0].mxu0
  %v372 = vadd.f32 %v304, %v371
  %v373 = vpop.f32.mrb[0].mxu0
  %v374 = vpop.f32.mrb[0].mxu0
  %v375 = vadd.f32 %v309, %v374
  %v376 = vpop.f32.mrb[0].mxu0
  %377 = vmatprep.mubr.bf16.mxu0 0
  %378 = vmatmul.mubr.bf16.gmra.mrb[0].mxu0 %v335
  %v379 = vpop.f32.mrb[0].mxu0
  %v380 = vadd.f32 %v314, %v379
  %v381 = vpop.f32.mrb[0].mxu0
  %v382 = vpop.f32.mrb[0].mxu0
  %v383 = vadd.f32 %v319, %v382
  %v384 = vpop.f32.mrb[0].mxu0
  %385 = vdwg.mxu0
  %v386 = vmax.f32 %v372, 0.0
  %v387 = vmax.f32 %v375, 0.0
  %v388 = vmax.f32 %v380, 0.0
  %v389 = vmax.f32 %v383, 0.0
  %v390 = vpack.c.bf16 %v387, %v386
  %v391 = vpack.c.bf16 %v389, %v388
  %v392 = vld [vmem:[%s7] sm:$0xf]
  %v393 = vld [vmem:[%s7 + $0x4] sm:$0xf]
  %v394 = vld [vmem:[%s7 + $0x8] sm:$0xf]
  %v395 = vld [vmem:[%s7 + $0xc] sm:$0xf]
  %v396 = vld [vmem:[%s8] sm:$0xff]
  %v397 = vld [vmem:[%s8 + $0x8] sm:$0xff]
  %v398 = vld [vmem:[%s8 + $0x10] sm:$0xff]
  %v399 = vld [vmem:[%s8 + $0x18] sm:$0xff]
  %401 = vset.pattern.permute.xlu0 0
  %402 = vperm.xlu0 %401, %v396
  %v403 = vpop.permute.xlu0 %402
  %406 = vset.pattern.permute.xlu0 0
  %407 = vperm.xlu0 %406, %v397
  %v408 = vpop.permute.xlu0 %407
  %411 = vset.pattern.permute.xlu0 0
  %412 = vperm.xlu0 %411, %v398
  %v413 = vpop.permute.xlu0 %412
  %416 = vset.pattern.permute.xlu0 0
  %417 = vperm.xlu0 %416, %v399
  %v418 = vpop.permute.xlu0 %417
  %v424 = vunpack.c.l.b16 %v392
  %v425 = vunpack.c.l.b16 %v393
  %v426 = vunpack.c.l.b16 %v394
  %v427 = vunpack.c.l.b16 %v395
  %v428 = vpack.c.b16 %v425, %v424
  %v429 = vpack.c.b16 %v427, %v426
  %v431 = vsel %vm231, %v428, 0
  %v434 = vsel %vm231, %v429, 0
  %436 = vmatprep.subr.bf16.mxu0 0
  %437 = vmatpush1.bf16.msra.mxu0 %v390
  %438 = vmatprep.subr.bf16.mxu0 0
  %439 = vmatpush1.bf16.msra.mxu0 %v391
  %440 = vmatprep.subr.bf16.mxu0 0
  %441 = vmatpush1.bf16.msra.mxu0 0
  %442 = vmatprep.subr.bf16.mxu0 0
  %443 = vmatpush1.bf16.msra.mxu0 0
  %444 = vmatprep.subr.bf16.mxu0 0
  %445 = vmatpush1.bf16.msra.mxu0 0
  %446 = vmatprep.subr.bf16.mxu0 0
  %447 = vmatpush1.bf16.msra.mxu0 0
  %448 = vmatprep.subr.bf16.mxu0 0
  %449 = vmatpush1.bf16.msra.mxu0 0
  %450 = vmatprep.subr.bf16.mxu0 0
  %451 = vmatpush1.bf16.msra.mxu0 0
  %452 = vmatprep.subr.bf16.mxu0 0
  %453 = vmatpush1.bf16.msra.mxu0 0
  %454 = vmatprep.subr.bf16.mxu0 0
  %455 = vmatpush1.bf16.msra.mxu0 0
  %456 = vmatprep.subr.bf16.mxu0 0
  %457 = vmatpush1.bf16.msra.mxu0 0
  %458 = vmatprep.subr.bf16.mxu0 0
  %459 = vmatpush1.bf16.msra.mxu0 0
  %460 = vmatprep.subr.bf16.mxu0 0
  %461 = vmatpush1.bf16.msra.mxu0 0
  %462 = vmatprep.subr.bf16.mxu0 0
  %463 = vmatpush1.bf16.msra.mxu0 0
  %464 = vmatprep.subr.bf16.mxu0 0
  %465 = vmatpush1.bf16.msra.mxu0 0
  %466 = vmatprep.subr.bf16.mxu0 0
  %467 = vmatpush1.bf16.msra.mxu0 0
  %468 = vmatprep.mubr.bf16.mxu0 0
  %469 = vmatmul.mubr.bf16.gmra.mrb[0].mxu0 %v431
  %v470 = vpop.f32.mrb[0].mxu0
  %v471 = vadd.f32 %v403, %v470
  %v472 = vpop.f32.mrb[0].mxu0
  %v473 = vpop.f32.mrb[0].mxu0
  %v474 = vadd.f32 %v408, %v473
  %v475 = vpop.f32.mrb[0].mxu0
  %476 = vmatprep.mubr.bf16.mxu0 0
  %477 = vmatmul.mubr.bf16.gmra.mrb[0].mxu0 %v434
  %v478 = vpop.f32.mrb[0].mxu0
  %v479 = vadd.f32 %v413, %v478
  %v480 = vpop.f32.mrb[0].mxu0
  %v481 = vpop.f32.mrb[0].mxu0
  %v482 = vadd.f32 %v418, %v481
  %v483 = vpop.f32.mrb[0].mxu0
  %484 = vdwg.mxu0
  %v485 = vmax.f32 %v471, 0.0
  %v486 = vmax.f32 %v474, 0.0
  %v487 = vmax.f32 %v479, 0.0
  %v488 = vmax.f32 %v482, 0.0
  %v489 = vpack.c.bf16 %v486, %v485
  %v490 = vpack.c.bf16 %v488, %v487
  %v491 = vld [vmem:[%s9] sm:$0xf]
  %v492 = vld [vmem:[%s9 + $0x4] sm:$0xf]
  %v493 = vld [vmem:[%s9 + $0x8] sm:$0xf]
  %v494 = vld [vmem:[%s9 + $0xc] sm:$0xf]
  %v495 = vld [vmem:[%s10] sm:$0xff]
  %v496 = vld [vmem:[%s10 + $0x8] sm:$0xff]
  %v497 = vld [vmem:[%s10 + $0x10] sm:$0xff]
  %v498 = vld [vmem:[%s10 + $0x18] sm:$0xff]
  %500 = vset.pattern.permute.xlu0 0
  %501 = vperm.xlu0 %500, %v495
  %v502 = vpop.permute.xlu0 %501
  %505 = vset.pattern.permute.xlu0 0
  %506 = vperm.xlu0 %505, %v496
  %v507 = vpop.permute.xlu0 %506
  %510 = vset.pattern.permute.xlu0 0
  %511 = vperm.xlu0 %510, %v497
  %v512 = vpop.permute.xlu0 %511
  %515 = vset.pattern.permute.xlu0 0
  %516 = vperm.xlu0 %515, %v498
  %v517 = vpop.permute.xlu0 %516
  %v523 = vunpack.c.l.b16 %v491
  %v524 = vunpack.c.l.b16 %v492
  %v525 = vunpack.c.l.b16 %v493
  %v526 = vunpack.c.l.b16 %v494
  %v527 = vpack.c.b16 %v524, %v523
  %v528 = vpack.c.b16 %v526, %v525
  %v530 = vsel %vm231, %v527, 0
  %v533 = vsel %vm231, %v528, 0
  %535 = vmatprep.subr.bf16.mxu0 0
  %536 = vmatpush1.bf16.msra.mxu0 %v489
  %537 = vmatprep.subr.bf16.mxu0 0
  %538 = vmatpush1.bf16.msra.mxu0 %v490
  %539 = vmatprep.subr.bf16.mxu0 0
  %540 = vmatpush1.bf16.msra.mxu0 0
  %541 = vmatprep.subr.bf16.mxu0 0
  %542 = vmatpush1.bf16.msra.mxu0 0
  %543 = vmatprep.subr.bf16.mxu0 0
  %544 = vmatpush1.bf16.msra.mxu0 0
  %545 = vmatprep.subr.bf16.mxu0 0
  %546 = vmatpush1.bf16.msra.mxu0 0
  %547 = vmatprep.subr.bf16.mxu0 0
  %548 = vmatpush1.bf16.msra.mxu0 0
  %549 = vmatprep.subr.bf16.mxu0 0
  %550 = vmatpush1.bf16.msra.mxu0 0
  %551 = vmatprep.subr.bf16.mxu0 0
  %552 = vmatpush1.bf16.msra.mxu0 0
  %553 = vmatprep.subr.bf16.mxu0 0
  %554 = vmatpush1.bf16.msra.mxu0 0
  %555 = vmatprep.subr.bf16.mxu0 0
  %556 = vmatpush1.bf16.msra.mxu0 0
  %557 = vmatprep.subr.bf16.mxu0 0
  %558 = vmatpush1.bf16.msra.mxu0 0
  %559 = vmatprep.subr.bf16.mxu0 0
  %560 = vmatpush1.bf16.msra.mxu0 0
  %561 = vmatprep.subr.bf16.mxu0 0
  %562 = vmatpush1.bf16.msra.mxu0 0
  %563 = vmatprep.subr.bf16.mxu0 0
  %564 = vmatpush1.bf16.msra.mxu0 0
  %565 = vmatprep.subr.bf16.mxu0 0
  %566 = vmatpush1.bf16.msra.mxu0 0
  %567 = vmatprep.mubr.bf16.mxu0 0
  %568 = vmatmul.mubr.bf16.gmra.mrb[0].mxu0 %v530
  %v569 = vpop.f32.mrb[0].mxu0
  %v570 = vadd.f32 %v502, %v569
  %v571 = vpop.f32.mrb[0].mxu0
  %v572 = vpop.f32.mrb[0].mxu0
  %v573 = vadd.f32 %v507, %v572
  %v574 = vpop.f32.mrb[0].mxu0
  %575 = vmatprep.mubr.bf16.mxu0 0
  %576 = vmatmul.mubr.bf16.gmra.mrb[0].mxu0 %v533
  %v577 = vpop.f32.mrb[0].mxu0
  %v578 = vadd.f32 %v512, %v577
  %v579 = vpop.f32.mrb[0].mxu0
  %v580 = vpop.f32.mrb[0].mxu0
  %v581 = vadd.f32 %v517, %v580
  %v582 = vpop.f32.mrb[0].mxu0
  %583 = vdwg.mxu0
  %v584 = vmax.f32 %v570, 0.0
  %v585 = vmax.f32 %v573, 0.0
  %v586 = vmax.f32 %v578, 0.0
  %v587 = vmax.f32 %v581, 0.0
  %v588 = vpack.c.bf16 %v585, %v584
  %v589 = vpack.c.bf16 %v587, %v586
  %v590 = vld [vmem:[%s11] sm:$0xf]
  %v591 = vld [vmem:[%s12] sm:$0xff]
  %593 = vset.pattern.permute.xlu0 0
  %594 = vperm.xlu0 %593, %v591
  %v595 = vpop.permute.xlu0 %594
  %v598 = vsel %vm231, %v590, 0
  %600 = vmatprep.subr.bf16.mxu0 0
  %601 = vmatpush1.bf16.msra.mxu0 %v588
  %602 = vmatprep.subr.bf16.mxu0 0
  %603 = vmatpush1.bf16.msra.mxu0 %v589
  %604 = vmatprep.subr.bf16.mxu0 0
  %605 = vmatpush1.bf16.msra.mxu0 0
  %606 = vmatprep.subr.bf16.mxu0 0
  %607 = vmatpush1.bf16.msra.mxu0 0
  %608 = vmatprep.subr.bf16.mxu0 0
  %609 = vmatpush1.bf16.msra.mxu0 0
  %610 = vmatprep.subr.bf16.mxu0 0
  %611 = vmatpush1.bf16.msra.mxu0 0
  %612 = vmatprep.subr.bf16.mxu0 0
  %613 = vmatpush1.bf16.msra.mxu0 0
  %614 = vmatprep.subr.bf16.mxu0 0
  %615 = vmatpush1.bf16.msra.mxu0 0
  %616 = vmatprep.subr.bf16.mxu0 0
  %617 = vmatpush1.bf16.msra.mxu0 0
  %618 = vmatprep.subr.bf16.mxu0 0
  %619 = vmatpush1.bf16.msra.mxu0 0
  %620 = vmatprep.subr.bf16.mxu0 0
  %621 = vmatpush1.bf16.msra.mxu0 0
  %622 = vmatprep.subr.bf16.mxu0 0
  %623 = vmatpush1.bf16.msra.mxu0 0
  %624 = vmatprep.subr.bf16.mxu0 0
  %625 = vmatpush1.bf16.msra.mxu0 0
  %626 = vmatprep.subr.bf16.mxu0 0
  %627 = vmatpush1.bf16.msra.mxu0 0
  %628 = vmatprep.subr.bf16.mxu0 0
  %629 = vmatpush1.bf16.msra.mxu0 0
  %630 = vmatprep.subr.bf16.mxu0 0
  %631 = vmatpush1.bf16.msra.mxu0 0
  %632 = vmatprep.mubr.bf16.mxu0 0
  %633 = vmatmul.mubr.bf16.gmra.mrb[0].mxu0 %v598
  %v634 = vpop.f32.mrb[0].mxu0
  %v635 = vadd.f32 %v595, %v634
  %v636 = vpop.f32.mrb[0].mxu0
  %v637 = vpop.f32.mrb[0].mxu0
  %v638 = vpop.f32.mrb[0].mxu0
  %639 = vdwg.mxu0
  %640 = vst [vmem:[%s13] sm:$0xff] %v635
  // Predicated region
  $region54: #{dqn_forward.1} parent=0 // pred_check
    _
  $region55: #{dqn_forward.1} parent=0 // pred_check_branch
    %642 = sbr.rel (0) target = $region57
  $region56: #{dqn_forward.1} parent=0 // pred_region
    _
  $region57: #{dqn_forward.1} parent=0 // pred_fallthru
    _
  // Predicated region
  $region58: #{dqn_forward.1} parent=0 // pred_check
    _
  $region59: #{dqn_forward.1} parent=0 // pred_check_branch
    %644 = sbr.rel (0) target = $region61
  $region60: #{dqn_forward.1} parent=0 // pred_region
    _
  $region61: #{dqn_forward.1} parent=0 // pred_fallthru
    _

</llo_original>
